<compile_context>
chip_gen: v5e
topology: v5e:2x2
jax: 0.10.0
libtpu: 0.0.40
codegen_flags: <defaults>
</compile_context>

<pallas_src>
import jax
import jax.numpy as jnp
from jax import lax
from jax.experimental import pallas as pl
from jax.experimental.pallas import tpu as pltpu


LANES = 512              # lane-dense last dim (multiple of 128)
MAX_BLOCK_ROWS = 1024    # 1024x512 f32 = 2 MiB / input / step (x2 bufs x2 inputs = 8 MiB)
GROUP_ROWS = 32          # rows per inner accumulation chunk (16 f32 vregs per operand)
SMALL_N_THRESHOLD = 1 << 20  # below this, a fused XLA expression is faster than the kernel


def _cdiv(a, b):
    return -(-a // b)


def _round_up(a, b):
    return _cdiv(a, b) * b


def _make_kernel(valid_rows, block_rows, num_steps):
    """Build the kernel with static (valid_rows, block_rows, num_steps) closed over."""
    num_groups = block_rows // GROUP_ROWS
    has_edge = (valid_rows % block_rows) != 0
    edge_rows = valid_rows - (num_steps - 1) * block_rows  # valid rows in last block

    def _partial_sum(o_ref, t_ref, valid_in_block):
        # Sum of squared diffs over this block, reduced to an (8, LANES) slab.
        # The running partial lives in 4 vregs (fori_loop carry); only o/t are
        # streamed from VMEM -> ~2 vld per output vreg of data.
        def body(g, part):
            r = pl.multiple_of(g * GROUP_ROWS, GROUP_ROWS)
            o = o_ref[pl.ds(r, GROUP_ROWS), :].astype(jnp.float32)
            t = t_ref[pl.ds(r, GROUP_ROWS), :].astype(jnp.float32)
            d = o - t
            dd = d * d
            if valid_in_block is not None:
                # Mask rows past the end of the (edge) block: Pallas leaves
                # out-of-range rows of an edge block unspecified.
                rid = r + lax.broadcasted_iota(jnp.int32, (GROUP_ROWS, LANES), 0)
                dd = jnp.where(rid < valid_in_block, dd, 0.0)
            # Tile-aligned reshape (groups of 8 sublanes) -> pure VALU adds.
            return part + dd.reshape(-1, 8, LANES).sum(axis=0)

        init = jnp.zeros((8, LANES), jnp.float32)
        return lax.fori_loop(0, num_groups, body, init)

    def kernel(o_ref, t_ref, out_ref, acc_ref):
        s = pl.program_id(0)

        @pl.when(s == 0)
        def _():
            acc_ref[...] = jnp.zeros_like(acc_ref)

        if has_edge:
            @pl.when(s == num_steps - 1)
            def _():
                acc_ref[...] += _partial_sum(o_ref, t_ref, edge_rows)

            @pl.when(s != num_steps - 1)
            def _():
                acc_ref[...] += _partial_sum(o_ref, t_ref, None)
        else:
            acc_ref[...] += _partial_sum(o_ref, t_ref, None)

        @pl.when(s == num_steps - 1)
        def _():
            out_ref[0, 0] = jnp.sum(acc_ref[...])  # single small cross-lane reduce

    return kernel


def center_loss(outputs, targets, *, min_pallas_elements=SMALL_N_THRESHOLD,
                max_block_rows=MAX_BLOCK_ROWS):
    """CenterLoss forward: sum((outputs - targets)^2) / outputs.shape[0]."""
    assert outputs.shape == targets.shape
    batch = outputs.shape[0]

    o = outputs.reshape(-1)
    t = targets.reshape(-1)
    n = o.shape[0]
    rows = n // LANES

    # ---- small-input fast path: fused XLA beats launch/tiling overhead ----
    if n < min_pallas_elements or rows == 0:
        d = o.astype(jnp.float32) - t.astype(jnp.float32)
        return jnp.sum(d * d) / jnp.float32(batch)

    # ---- split into a LANES-divisible bulk + tiny tail (no jnp.pad copies) ----
    bulk_n = rows * LANES
    tail = n - bulk_n
    if tail:
        o_bulk, o_tail = o[:bulk_n], o[bulk_n:]
        t_bulk, t_tail = t[:bulk_n], t[bulk_n:]
    else:
        o_bulk, t_bulk = o, t          # free reshape, no copy
        o_tail = t_tail = None

    o2 = o_bulk.reshape(rows, LANES)
    t2 = t_bulk.reshape(rows, LANES)

    # ---- minimal-padding tiling: steps first, then block_rows ----
    steps0 = max(1, _cdiv(rows, max_block_rows))
    block_rows = _round_up(max(1, _cdiv(rows, steps0)), GROUP_ROWS)
    steps = _cdiv(rows, block_rows)    # only the last block can be partial

    kernel = _make_kernel(rows, block_rows, steps)

    itemsize = jnp.dtype(o2.dtype).itemsize
    cost = pl.CostEstimate(
        flops=3 * bulk_n,                                   # sub + mul + add / element
        transcendentals=0,
        bytes_accessed=2 * bulk_n * itemsize + 4,
    )

    sq_sum = pl.pallas_call(
        kernel,
        out_shape=jax.ShapeDtypeStruct((1, 1), jnp.float32),
        grid_spec=pltpu.PrefetchScalarGridSpec(
            num_scalar_prefetch=0,
            grid=(steps,),
            in_specs=[
                pl.BlockSpec((block_rows, LANES), lambda s: (s, 0)),
                pl.BlockSpec((block_rows, LANES), lambda s: (s, 0)),
            ],
            out_specs=pl.BlockSpec((1, 1), lambda s: (0, 0),
                                   memory_space=pltpu.SMEM),
            scratch_shapes=[pltpu.VMEM((8, LANES), jnp.float32)],
        ),
        compiler_params=pltpu.CompilerParams(
            dimension_semantics=("arbitrary",),
        ),
        cost_estimate=cost,
    )(o2, t2)[0, 0]

    if tail:
        dt = o_tail.astype(jnp.float32) - t_tail.astype(jnp.float32)
        sq_sum = sq_sum + jnp.sum(dt * dt)

    return sq_sum / jnp.float32(batch)


if __name__ == "__main__":
    key = jax.random.PRNGKey(0)
    k1, k2, k3, k4 = jax.random.split(key, 4)

    # CAL-style small shapes: (batch, num_attentions, feat_dim)
    B, M, D = 2, 8, 32
    outputs = jax.random.normal(k1, (B, M, D), dtype=jnp.float32)
    targets = jax.random.normal(k2, (B, M, D), dtype=jnp.float32)
    ref = jnp.sum((outputs - targets) ** 2) / B

    # 1) Default call -> small-input fast path.
    loss_fast = center_loss(outputs, targets)
    jax.block_until_ready(loss_fast)
    assert jnp.allclose(loss_fast, ref, rtol=1e-5, atol=1e-5), (loss_fast, ref)

    # 2) Same small input forced through the Pallas kernel
    #    (exercises edge-row masking: 512 elems -> 1 valid row in a 32-row block).
    loss_kernel = center_loss(outputs, targets, min_pallas_elements=0)
    jax.block_until_ready(loss_kernel)
    assert jnp.allclose(loss_kernel, ref, rtol=1e-5, atol=1e-5), (loss_kernel, ref)

    # 3) Odd sizes: lane tail + multiple grid steps + partial last block.
    o3 = jax.random.normal(k3, (3, 41, 257), dtype=jnp.float32)
    t3 = jax.random.normal(k4, (3, 41, 257), dtype=jnp.float32)
    loss3 = center_loss(o3, t3, min_pallas_elements=0, max_block_rows=32)
    jax.block_until_ready(loss3)
    ref3 = jnp.sum((o3 - t3) ** 2) / 3
    assert jnp.allclose(loss3, ref3, rtol=1e-5, atol=1e-5), (loss3, ref3)

    # 4) bf16 inputs pass straight through (halved HBM bytes); f32 math in-kernel.
    ob = outputs.astype(jnp.bfloat16)
    tb = targets.astype(jnp.bfloat16)
    loss_bf16 = center_loss(ob, tb, min_pallas_elements=0)
    jax.block_until_ready(loss_bf16)
    ref_bf16 = jnp.sum((ob.astype(jnp.float32) - tb.astype(jnp.float32)) ** 2) / B
    assert jnp.allclose(loss_bf16, ref_bf16, rtol=1e-4, atol=1e-4), (loss_bf16, ref_bf16)

    print("KERNEL_OK")
</pallas_src>

<mosaic_0001>
module attributes {stable_mosaic.version = 11 : i64} {
  func.func @kernel(%arg0: i32, %arg1: memref<32x512xf32, #tpu.memory_space<vmem>>, %arg2: memref<32x512xf32, #tpu.memory_space<vmem>>, %arg3: memref<1x1xf32, #tpu.memory_space<smem>>, %arg4: memref<8x512xf32, #tpu.memory_space<vmem>>) attributes {dimension_semantics = [#tpu.dimension_semantics<arbitrary>], iteration_bounds = array<i64: 1>, scalar_prefetch = 0 : i64, scratch_operands = 1 : i64, tpu.core_type = #tpu.core_type<tc>, window_params = [{transform_indices = @transform_0, window_bounds = array<i64: 32, 512>}, {transform_indices = @transform_1, window_bounds = array<i64: 32, 512>}, {transform_indices = @transform_2, window_bounds = array<i64: 1, 1>}]} {
    %c0_i32 = arith.constant 0 : i32
    %0 = arith.cmpi eq, %arg0, %c0_i32 : i32
    %1 = arith.extui %0 : i1 to i32
    %c0_i32_0 = arith.constant 0 : i32
    %2 = arith.cmpi ne, %1, %c0_i32_0 : i32
    scf.if %2 {
      %cst = arith.constant 0.000000e+00 : f32
      %12 = vector.broadcast %cst : f32 to vector<8x512xf32>
      %c0 = arith.constant 0 : index
      %c0_7 = arith.constant 0 : index
      %13 = vector.load %arg4[%c0, %c0_7] : memref<8x512xf32, #tpu.memory_space<vmem>>, vector<8x512xf32>
      tpu.vector_store %arg4[%c0, %c0_7], %12 {strides = array<i32>} : memref<8x512xf32, #tpu.memory_space<vmem>>, vector<8x512xf32>,
    } else {
    }
    %c0_i32_1 = arith.constant 0 : i32
    %3 = arith.cmpi eq, %arg0, %c0_i32_1 : i32
    %4 = arith.extui %3 : i1 to i32
    %c0_i32_2 = arith.constant 0 : i32
    %5 = arith.cmpi ne, %4, %c0_i32_2 : i32
    scf.if %5 {
      %c0 = arith.constant 0 : index
      %c0_7 = arith.constant 0 : index
      %12 = vector.load %arg4[%c0, %c0_7] : memref<8x512xf32, #tpu.memory_space<vmem>>, vector<8x512xf32>
      %cst = arith.constant 0.000000e+00 : f32
      %13 = vector.broadcast %cst : f32 to vector<8x512xf32>
      %c0_i32_8 = arith.constant 0 : i32
      %c32_i32 = arith.constant 32 : i32
      %14 = arith.muli %c0_i32_8, %c32_i32 : i32
      %15 = tpu.assume_multiple %14, 32 : i32
      %16 = arith.index_cast %15 : i32 to index
      %c0_9 = arith.constant 0 : index
      %17 = vector.load %arg1[%16, %c0_9] : memref<32x512xf32, #tpu.memory_space<vmem>>, vector<32x512xf32>
      %18 = arith.index_cast %15 : i32 to index
      %c0_10 = arith.constant 0 : index
      %19 = vector.load %arg2[%18, %c0_10] : memref<32x512xf32, #tpu.memory_space<vmem>>, vector<32x512xf32>
      %20 = arith.subf %17, %19 : vector<32x512xf32>
      %21 = arith.mulf %20, %20 : vector<32x512xf32>
      %22 = tpu.iota {dimensions = array<i32: 0>} : vector<32x512xi32>
      %23 = vector.broadcast %15 : i32 to vector<32x512xi32>
      %24 = arith.addi %23, %22 : vector<32x512xi32>
      %c1_i32 = arith.constant 1 : i32
      %25 = vector.broadcast %c1_i32 : i32 to vector<32x512xi32>
      %26 = arith.cmpi slt, %24, %25 : vector<32x512xi32>
      %cst_11 = arith.constant 0.000000e+00 : f32
      %27 = vector.broadcast %cst_11 : f32 to vector<32x512xf32>
      %28 = arith.select %26, %21, %27 : vector<32x512xi1>, vector<32x512xf32>
      %29 = vector.shape_cast %28 : vector<32x512xf32> to vector<4x8x512xf32>
      %cst_12 = arith.constant dense<0.000000e+00> : vector<8x512xf32>
      %30 = vector.multi_reduction <add>, %29, %cst_12 [0] : vector<4x8x512xf32> to vector<8x512xf32>
      %31 = arith.addf %13, %30 : vector<8x512xf32>
      %c1_i32_13 = arith.constant 1 : i32
      %32 = arith.addf %12, %31 : vector<8x512xf32>
      %c0_14 = arith.constant 0 : index
      %c0_15 = arith.constant 0 : index
      %33 = vector.load %arg4[%c0_14, %c0_15] : memref<8x512xf32, #tpu.memory_space<vmem>>, vector<8x512xf32>
      tpu.vector_store %arg4[%c0_14, %c0_15], %32 {strides = array<i32>} : memref<8x512xf32, #tpu.memory_space<vmem>>, vector<8x512xf32>,
    } else {
    }
    %c0_i32_3 = arith.constant 0 : i32
    %6 = arith.cmpi ne, %arg0, %c0_i32_3 : i32
    %7 = arith.extui %6 : i1 to i32
    %c0_i32_4 = arith.constant 0 : i32
    %8 = arith.cmpi ne, %7, %c0_i32_4 : i32
    scf.if %8 {
      %c0 = arith.constant 0 : index
      %c0_7 = arith.constant 0 : index
      %12 = vector.load %arg4[%c0, %c0_7] : memref<8x512xf32, #tpu.memory_space<vmem>>, vector<8x512xf32>
      %cst = arith.constant 0.000000e+00 : f32
      %13 = vector.broadcast %cst : f32 to vector<8x512xf32>
      %c0_i32_8 = arith.constant 0 : i32
      %c32_i32 = arith.constant 32 : i32
      %14 = arith.muli %c0_i32_8, %c32_i32 : i32
      %15 = tpu.assume_multiple %14, 32 : i32
      %16 = arith.index_cast %15 : i32 to index
      %c0_9 = arith.constant 0 : index
      %17 = vector.load %arg1[%16, %c0_9] : memref<32x512xf32, #tpu.memory_space<vmem>>, vector<32x512xf32>
      %18 = arith.index_cast %15 : i32 to index
      %c0_10 = arith.constant 0 : index
      %19 = vector.load %arg2[%18, %c0_10] : memref<32x512xf32, #tpu.memory_space<vmem>>, vector<32x512xf32>
      %20 = arith.subf %17, %19 : vector<32x512xf32>
      %21 = arith.mulf %20, %20 : vector<32x512xf32>
      %22 = vector.shape_cast %21 : vector<32x512xf32> to vector<4x8x512xf32>
      %cst_11 = arith.constant dense<0.000000e+00> : vector<8x512xf32>
      %23 = vector.multi_reduction <add>, %22, %cst_11 [0] : vector<4x8x512xf32> to vector<8x512xf32>
      %24 = arith.addf %13, %23 : vector<8x512xf32>
      %c1_i32 = arith.constant 1 : i32
      %25 = arith.addf %12, %24 : vector<8x512xf32>
      %c0_12 = arith.constant 0 : index
      %c0_13 = arith.constant 0 : index
      %26 = vector.load %arg4[%c0_12, %c0_13] : memref<8x512xf32, #tpu.memory_space<vmem>>, vector<8x512xf32>
      tpu.vector_store %arg4[%c0_12, %c0_13], %25 {strides = array<i32>} : memref<8x512xf32, #tpu.memory_space<vmem>>, vector<8x512xf32>,
    } else {
    }
    %c0_i32_5 = arith.constant 0 : i32
    %9 = arith.cmpi eq, %arg0, %c0_i32_5 : i32
    %10 = arith.extui %9 : i1 to i32
    %c0_i32_6 = arith.constant 0 : i32
    %11 = arith.cmpi ne, %10, %c0_i32_6 : i32
    scf.if %11 {
      %c0 = arith.constant 0 : index
      %c0_7 = arith.constant 0 : index
      %12 = vector.load %arg4[%c0, %c0_7] : memref<8x512xf32, #tpu.memory_space<vmem>>, vector<8x512xf32>
      %13 = vector.shape_cast %12 : vector<8x512xf32> to vector<1x8x512xf32>
      %cst = arith.constant dense<0.000000e+00> : vector<1xf32>
      %14 = vector.multi_reduction <add>, %13, %cst [1, 2] : vector<1x8x512xf32> to vector<1xf32>
      %15 = vector.shape_cast %14 : vector<1xf32> to vector<1x1x1xf32>
      %16 = vector.extract %15[0, 0, 0] : f32 from vector<1x1x1xf32>
      %c0_8 = arith.constant 0 : index
      %c0_9 = arith.constant 0 : index
      %17 = memref.load %arg3[%c0_8, %c0_9] : memref<1x1xf32, #tpu.memory_space<smem>>
      memref.store %16, %arg3[%c0_8, %c0_9] : memref<1x1xf32, #tpu.memory_space<smem>>
    } else {
    }
    return
  }
  func.func @transform_0(%arg0: i32) -> (i32, i32) {
    %c0_i32 = arith.constant 0 : i32
    %c0_i32_0 = arith.constant 0 : i32
    return %arg0, %c0_i32 : i32, i32
  }
  func.func @transform_1(%arg0: i32) -> (i32, i32) {
    %c0_i32 = arith.constant 0 : i32
    %c0_i32_0 = arith.constant 0 : i32
    return %arg0, %c0_i32 : i32, i32
  }
  func.func @transform_2(%arg0: i32) -> (i32, i32) {
    %c0_i32 = arith.constant 0 : i32
    %c0_i32_0 = arith.constant 0 : i32
    %c0_i32_1 = arith.constant 0 : i32
    return %c0_i32, %c0_i32_0 : i32, i32
  }
}

</mosaic_0001>

<llo_original>
// kernel: tpu_custom_call.1
$region0: #{tpu_custom_call.1}
  #allocation0 [shape = 'u32[]', space=smem, size = 0x4, offset = 0x4, fixed_abs, tag = 'smem constant byte address 0x4 - core index']
  #allocation1 [shape = 'u32[72,128]{1,0:T(1,128)}', space=vmem, size = 0x9000, scoped, tag = 'internal scratch']
  #allocation2 [shape = 'f32[8,512]{1,0:T(8,128)}', space=vmem, size = 0x4000, scoped, tag = 'scratch operand']
  %s0 = inlined_call_operand.hbm [shape: f32[1,512], index: 0, kind: input, shape index: {}]
  %s1 = inlined_call_operand.hbm [shape: f32[1,512], index: 1, kind: input, shape index: {}]
  %s2 = inlined_call_operand.hbm [shape: f32[1,1], index: 2, kind: output, shape index: {}]
  %s3 = sld [smem:[#allocation0]]
  $region38: #{tpu_custom_call.1} parent=0
    _
  %s5 = ssub.s32 1, %s3
  %s6 = scalar_select 0, %s5, %s3
  $region1: #{tpu_custom_call.1} parent=0
    #allocation3 [shape = 'u8[65536]{0}', space=vmem, size = 0x10000, scoped, tag = 'input window, operand 0, single buffered']
    #allocation4 [shape = 's32[1]{0}', space=sflag, size = 0x4, scoped, tag = 'scoped memory for tpu_custom_call.1']
    #allocation5 [shape = 's32[1]{0}', space=sflag, size = 0x4, scoped, tag = 'scoped memory for tpu_custom_call.1']
    #allocation6 [shape = 'u8[65536]{0}', space=vmem, size = 0x10000, scoped, tag = 'input window, operand 1, single buffered']
    #allocation7 [shape = 's32[1]{0}', space=sflag, size = 0x4, scoped, tag = 'scoped memory for tpu_custom_call.1']
    #allocation8 [shape = 'u8[512]{0}', space=smem, size = 0x200, scoped, tag = 'output window, operand 0, single buffered']
    %7 = vsyncpa [#allocation4], 0
    %8 = vsyncpa [#allocation7], 0
    %9 = vsyncpa [#allocation5], 0
    // Predicated region
    $region2: #{tpu_custom_call.1} parent=1 // pred_check
      _
    $region3: #{tpu_custom_call.1} parent=1 // pred_check_branch
      %11 = sbr.rel (0) target = $region5
    $region4: #{tpu_custom_call.1} parent=1 // pred_region
      %13 = vsyncadd [#allocation4], 1984
      %s14 = sshll.u32 %s0, 4
      %s15 = int_to_ptr.hbm [resolvable:$true] %s14
      %s16 = sshll.u32 [#allocation3], 4
      %s17 = int_to_ptr.vmem [resolvable:$true] %s16
      %22 = dma.hbm_to_vmem [thread:$0]  %s15, 64, %s17, [#allocation4], 64, 64, 4
    $region5: #{tpu_custom_call.1} parent=1 // pred_fallthru
      _
    // Predicated region
    $region6: #{tpu_custom_call.1} parent=1 // pred_check
      _
    $region7: #{tpu_custom_call.1} parent=1 // pred_check_branch
      %24 = sbr.rel (0) target = $region9
    $region8: #{tpu_custom_call.1} parent=1 // pred_region
      %26 = vsyncadd [#allocation7], 1984
      %s27 = sshll.u32 %s1, 4
      %s28 = int_to_ptr.hbm [resolvable:$true] %s27
      %s29 = sshll.u32 [#allocation6], 4
      %s30 = int_to_ptr.vmem [resolvable:$true] %s29
      %35 = dma.hbm_to_vmem [thread:$0]  %s28, 64, %s30, [#allocation7], 64, 64, 4
    $region9: #{tpu_custom_call.1} parent=1 // pred_fallthru
      _
    // Predicated region
    $region10: #{tpu_custom_call.1} parent=1 // pred_check
      _
    $region11: #{tpu_custom_call.1} parent=1 // pred_check_branch
      %37 = sbr.rel (0) target = $region13
    $region12: #{tpu_custom_call.1} parent=1 // pred_region
      %39 = dma.done [#allocation4], 2048
    $region13: #{tpu_custom_call.1} parent=1 // pred_fallthru
      _
    // Predicated region
    $region14: #{tpu_custom_call.1} parent=1 // pred_check
      _
    $region15: #{tpu_custom_call.1} parent=1 // pred_check_branch
      %41 = sbr.rel (0) target = $region17
    $region16: #{tpu_custom_call.1} parent=1 // pred_region
      %43 = dma.done [#allocation7], 2048
    $region17: #{tpu_custom_call.1} parent=1 // pred_fallthru
      _
    %p44 = scmp.eq.s32.totalorder 0, 0
    // Predicated region
    $region18: #{tpu_custom_call.1} parent=1 // pred_check
      %p45 = pneg %p44
    $region19: #{tpu_custom_call.1} parent=1 // pred_check_branch
      %47 = sbr.rel (%p45) target = $region21
    $region20: #{tpu_custom_call.1} parent=1 // pred_region
      %48 = vst [vmem:[#allocation2] sm:$0xff] 0.0
      %49 = vst [vmem:[#allocation2 + $0x8] sm:$0xff] 0.0
      %50 = vst [vmem:[#allocation2 + $0x10] sm:$0xff] 0.0
      %51 = vst [vmem:[#allocation2 + $0x18] sm:$0xff] 0.0
      %v52 = vld [vmem:[#allocation2] sm:$0xff]
      %v53 = vld [vmem:[#allocation2 + $0x8] sm:$0xff]
      %v54 = vld [vmem:[#allocation2 + $0x10] sm:$0xff]
      %v55 = vld [vmem:[#allocation2 + $0x18] sm:$0xff]
      %s56 = smul.u32 0, 4
      %s57 = scalar_lea.vmem [#allocation3], %s56
      %v58 = vld [vmem:[%s57] sm:$0xf]
      %v59 = vld [vmem:[%s57 + $0x4] sm:$0xf]
      %v60 = vld [vmem:[%s57 + $0x8] sm:$0xf]
      %v61 = vld [vmem:[%s57 + $0xc] sm:$0xf]
      %v62 = vld [vmem:[%s57 + $0x10] sm:$0xf]
      %v63 = vld [vmem:[%s57 + $0x14] sm:$0xf]
      %v64 = vld [vmem:[%s57 + $0x18] sm:$0xf]
      %v65 = vld [vmem:[%s57 + $0x1c] sm:$0xf]
      %v66 = vld [vmem:[%s57 + $0x20] sm:$0xf]
      %v67 = vld [vmem:[%s57 + $0x24] sm:$0xf]
      %v68 = vld [vmem:[%s57 + $0x28] sm:$0xf]
      %v69 = vld [vmem:[%s57 + $0x2c] sm:$0xf]
      %v70 = vld [vmem:[%s57 + $0x30] sm:$0xf]
      %v71 = vld [vmem:[%s57 + $0x34] sm:$0xf]
      %v72 = vld [vmem:[%s57 + $0x38] sm:$0xf]
      %v73 = vld [vmem:[%s57 + $0x3c] sm:$0xf]
      %v74 = vld [vmem:[%s57 + $0x40] sm:$0xf]
      %v75 = vld [vmem:[%s57 + $0x44] sm:$0xf]
      %v76 = vld [vmem:[%s57 + $0x48] sm:$0xf]
      %v77 = vld [vmem:[%s57 + $0x4c] sm:$0xf]
      %v78 = vld [vmem:[%s57 + $0x50] sm:$0xf]
      %v79 = vld [vmem:[%s57 + $0x54] sm:$0xf]
      %v80 = vld [vmem:[%s57 + $0x58] sm:$0xf]
      %v81 = vld [vmem:[%s57 + $0x5c] sm:$0xf]
      %v82 = vld [vmem:[%s57 + $0x60] sm:$0xf]
      %v83 = vld [vmem:[%s57 + $0x64] sm:$0xf]
      %v84 = vld [vmem:[%s57 + $0x68] sm:$0xf]
      %v85 = vld [vmem:[%s57 + $0x6c] sm:$0xf]
      %v86 = vld [vmem:[%s57 + $0x70] sm:$0xf]
      %v87 = vld [vmem:[%s57 + $0x74] sm:$0xf]
      %v88 = vld [vmem:[%s57 + $0x78] sm:$0xf]
      %v89 = vld [vmem:[%s57 + $0x7c] sm:$0xf]
      %s90 = scalar_lea.vmem [#allocation6], %s56
      %v91 = vld [vmem:[%s90] sm:$0xf]
      %v92 = vld [vmem:[%s90 + $0x4] sm:$0xf]
      %v93 = vld [vmem:[%s90 + $0x8] sm:$0xf]
      %v94 = vld [vmem:[%s90 + $0xc] sm:$0xf]
      %v95 = vld [vmem:[%s90 + $0x10] sm:$0xf]
      %v96 = vld [vmem:[%s90 + $0x14] sm:$0xf]
      %v97 = vld [vmem:[%s90 + $0x18] sm:$0xf]
      %v98 = vld [vmem:[%s90 + $0x1c] sm:$0xf]
      %v99 = vld [vmem:[%s90 + $0x20] sm:$0xf]
      %v100 = vld [vmem:[%s90 + $0x24] sm:$0xf]
      %v101 = vld [vmem:[%s90 + $0x28] sm:$0xf]
      %v102 = vld [vmem:[%s90 + $0x2c] sm:$0xf]
      %v103 = vld [vmem:[%s90 + $0x30] sm:$0xf]
      %v104 = vld [vmem:[%s90 + $0x34] sm:$0xf]
      %v105 = vld [vmem:[%s90 + $0x38] sm:$0xf]
      %v106 = vld [vmem:[%s90 + $0x3c] sm:$0xf]
      %v107 = vld [vmem:[%s90 + $0x40] sm:$0xf]
      %v108 = vld [vmem:[%s90 + $0x44] sm:$0xf]
      %v109 = vld [vmem:[%s90 + $0x48] sm:$0xf]
      %v110 = vld [vmem:[%s90 + $0x4c] sm:$0xf]
      %v111 = vld [vmem:[%s90 + $0x50] sm:$0xf]
      %v112 = vld [vmem:[%s90 + $0x54] sm:$0xf]
      %v113 = vld [vmem:[%s90 + $0x58] sm:$0xf]
      %v114 = vld [vmem:[%s90 + $0x5c] sm:$0xf]
      %v115 = vld [vmem:[%s90 + $0x60] sm:$0xf]
      %v116 = vld [vmem:[%s90 + $0x64] sm:$0xf]
      %v117 = vld [vmem:[%s90 + $0x68] sm:$0xf]
      %v118 = vld [vmem:[%s90 + $0x6c] sm:$0xf]
      %v119 = vld [vmem:[%s90 + $0x70] sm:$0xf]
      %v120 = vld [vmem:[%s90 + $0x74] sm:$0xf]
      %v121 = vld [vmem:[%s90 + $0x78] sm:$0xf]
      %v122 = vld [vmem:[%s90 + $0x7c] sm:$0xf]
      %v123 = vsub.f32 %v58, %v91
      %v124 = vsub.f32 %v59, %v92
      %v125 = vsub.f32 %v60, %v93
      %v126 = vsub.f32 %v61, %v94
      %v127 = vsub.f32 %v62, %v95
      %v128 = vsub.f32 %v63, %v96
      %v129 = vsub.f32 %v64, %v97
      %v130 = vsub.f32 %v65, %v98
      %v131 = vsub.f32 %v66, %v99
      %v132 = vsub.f32 %v67, %v100
      %v133 = vsub.f32 %v68, %v101
      %v134 = vsub.f32 %v69, %v102
      %v135 = vsub.f32 %v70, %v103
      %v136 = vsub.f32 %v71, %v104
      %v137 = vsub.f32 %v72, %v105
      %v138 = vsub.f32 %v73, %v106
      %v139 = vsub.f32 %v74, %v107
      %v140 = vsub.f32 %v75, %v108
      %v141 = vsub.f32 %v76, %v109
      %v142 = vsub.f32 %v77, %v110
      %v143 = vsub.f32 %v78, %v111
      %v144 = vsub.f32 %v79, %v112
      %v145 = vsub.f32 %v80, %v113
      %v146 = vsub.f32 %v81, %v114
      %v147 = vsub.f32 %v82, %v115
      %v148 = vsub.f32 %v83, %v116
      %v149 = vsub.f32 %v84, %v117
      %v150 = vsub.f32 %v85, %v118
      %v151 = vsub.f32 %v86, %v119
      %v152 = vsub.f32 %v87, %v120
      %v153 = vsub.f32 %v88, %v121
      %v154 = vsub.f32 %v89, %v122
      %v155 = vmul.f32 %v123, %v123
      %v156 = vmul.f32 %v124, %v124
      %v157 = vmul.f32 %v125, %v125
      %v158 = vmul.f32 %v126, %v126
      %v159 = vmul.f32 %v127, %v127
      %v160 = vmul.f32 %v128, %v128
      %v161 = vmul.f32 %v129, %v129
      %v162 = vmul.f32 %v130, %v130
      %v163 = vmul.f32 %v131, %v131
      %v164 = vmul.f32 %v132, %v132
      %v165 = vmul.f32 %v133, %v133
      %v166 = vmul.f32 %v134, %v134
      %v167 = vmul.f32 %v135, %v135
      %v168 = vmul.f32 %v136, %v136
      %v169 = vmul.f32 %v137, %v137
      %v170 = vmul.f32 %v138, %v138
      %v171 = vmul.f32 %v139, %v139
      %v172 = vmul.f32 %v140, %v140
      %v173 = vmul.f32 %v141, %v141
      %v174 = vmul.f32 %v142, %v142
      %v175 = vmul.f32 %v143, %v143
      %v176 = vmul.f32 %v144, %v144
      %v177 = vmul.f32 %v145, %v145
      %v178 = vmul.f32 %v146, %v146
      %v179 = vmul.f32 %v147, %v147
      %v180 = vmul.f32 %v148, %v148
      %v181 = vmul.f32 %v149, %v149
      %v182 = vmul.f32 %v150, %v150
      %v183 = vmul.f32 %v151, %v151
      %v184 = vmul.f32 %v152, %v152
      %v185 = vmul.f32 %v153, %v153
      %v186 = vmul.f32 %v154, %v154
      %v187 = vlaneseq
      %v188 = vshrl.u32 %v187, 7
      %v189 = vadd.s32 %v188, 8
      %v190 = vadd.s32 %v188, 16
      %v191 = vadd.s32 %v188, 24
      %v192 = vstv 0
      %v193 = vadd.s32 %v192, %v188
      %v194 = vadd.s32 %v192, %v189
      %v195 = vadd.s32 %v192, %v190
      %v196 = vadd.s32 %v192, %v191
      %vm197 = vcmp.lt.s32.totalorder %v193, 1
      %vm198 = vcmp.lt.s32.totalorder %v194, 1
      %vm199 = vcmp.lt.s32.totalorder %v195, 1
      %vm200 = vcmp.lt.s32.totalorder %v196, 1
      %233 = vst [vmem:[#allocation1] ss:$9 sm:$0xff] %v155
      %s234 = scalar_lea.vmem [#allocation1], 1
      %235 = vst [vmem:[%s234] ss:$9 sm:$0xff] %v156
      %s236 = scalar_lea.vmem [#allocation1], 2
      %237 = vst [vmem:[%s236] ss:$9 sm:$0xff] %v157
      %s238 = scalar_lea.vmem [#allocation1], 3
      %239 = vst [vmem:[%s238] ss:$9 sm:$0xff] %v158
      %s240 = scalar_lea.vmem [#allocation1], 4
      %241 = vst [vmem:[%s240] ss:$9 sm:$0xff] %v159
      %s242 = scalar_lea.vmem [#allocation1], 5
      %243 = vst [vmem:[%s242] ss:$9 sm:$0xff] %v160
      %s244 = scalar_lea.vmem [#allocation1], 6
      %245 = vst [vmem:[%s244] ss:$9 sm:$0xff] %v161
      %s246 = scalar_lea.vmem [#allocation1], 7
      %247 = vst [vmem:[%s246] ss:$9 sm:$0xff] %v162
      %v248 = vld [vmem:[#allocation1] sm:$0xff]
      %v249 = vld [vmem:[#allocation1 + $0x9] sm:$0xff]
      %v250 = vld [vmem:[#allocation1 + $0x12] sm:$0xff]
      %v251 = vld [vmem:[#allocation1 + $0x1b] sm:$0xff]
      %252 = vst [vmem:[#allocation1] ss:$9 sm:$0xff] %v163
      %253 = vst [vmem:[%s234] ss:$9 sm:$0xff] %v164
      %254 = vst [vmem:[%s236] ss:$9 sm:$0xff] %v165
      %255 = vst [vmem:[%s238] ss:$9 sm:$0xff] %v166
      %256 = vst [vmem:[%s240] ss:$9 sm:$0xff] %v167
      %257 = vst [vmem:[%s242] ss:$9 sm:$0xff] %v168
      %258 = vst [vmem:[%s244] ss:$9 sm:$0xff] %v169
      %259 = vst [vmem:[%s246] ss:$9 sm:$0xff] %v170
      %v260 = vld [vmem:[#allocation1] sm:$0xff]
      %v261 = vld [vmem:[#allocation1 + $0x9] sm:$0xff]
      %v262 = vld [vmem:[#allocation1 + $0x12] sm:$0xff]
      %v263 = vld [vmem:[#allocation1 + $0x1b] sm:$0xff]
      %264 = vst [vmem:[#allocation1] ss:$9 sm:$0xff] %v171
      %265 = vst [vmem:[%s234] ss:$9 sm:$0xff] %v172
      %266 = vst [vmem:[%s236] ss:$9 sm:$0xff] %v173
      %267 = vst [vmem:[%s238] ss:$9 sm:$0xff] %v174
      %268 = vst [vmem:[%s240] ss:$9 sm:$0xff] %v175
      %269 = vst [vmem:[%s242] ss:$9 sm:$0xff] %v176
      %270 = vst [vmem:[%s244] ss:$9 sm:$0xff] %v177
      %271 = vst [vmem:[%s246] ss:$9 sm:$0xff] %v178
      %v272 = vld [vmem:[#allocation1] sm:$0xff]
      %v273 = vld [vmem:[#allocation1 + $0x9] sm:$0xff]
      %v274 = vld [vmem:[#allocation1 + $0x12] sm:$0xff]
      %v275 = vld [vmem:[#allocation1 + $0x1b] sm:$0xff]
      %276 = vst [vmem:[#allocation1] ss:$9 sm:$0xff] %v179
      %277 = vst [vmem:[%s234] ss:$9 sm:$0xff] %v180
      %278 = vst [vmem:[%s236] ss:$9 sm:$0xff] %v181
      %279 = vst [vmem:[%s238] ss:$9 sm:$0xff] %v182
      %280 = vst [vmem:[%s240] ss:$9 sm:$0xff] %v183
      %281 = vst [vmem:[%s242] ss:$9 sm:$0xff] %v184
      %282 = vst [vmem:[%s244] ss:$9 sm:$0xff] %v185
      %283 = vst [vmem:[%s246] ss:$9 sm:$0xff] %v186
      %v284 = vld [vmem:[#allocation1] sm:$0xff]
      %v285 = vld [vmem:[#allocation1 + $0x9] sm:$0xff]
      %v286 = vld [vmem:[#allocation1 + $0x12] sm:$0xff]
      %v287 = vld [vmem:[#allocation1 + $0x1b] sm:$0xff]
      %v304 = vsel %vm197, %v248, 0.0
      %v305 = vsel %vm197, %v249, 0.0
      %v306 = vsel %vm197, %v250, 0.0
      %v307 = vsel %vm197, %v251, 0.0
      %v308 = vsel %vm198, %v260, 0.0
      %v309 = vsel %vm198, %v261, 0.0
      %v310 = vsel %vm198, %v262, 0.0
      %v311 = vsel %vm198, %v263, 0.0
      %v312 = vsel %vm199, %v272, 0.0
      %v313 = vsel %vm199, %v273, 0.0
      %v314 = vsel %vm199, %v274, 0.0
      %v315 = vsel %vm199, %v275, 0.0
      %v316 = vsel %vm200, %v284, 0.0
      %v317 = vsel %vm200, %v285, 0.0
      %v318 = vsel %vm200, %v286, 0.0
      %v319 = vsel %vm200, %v287, 0.0
      %v320 = vadd.f32 %v304, %v308
      %v321 = vadd.f32 %v320, %v312
      %v322 = vadd.f32 %v321, %v316
      %v323 = vadd.f32 %v305, %v309
      %v324 = vadd.f32 %v323, %v313
      %v325 = vadd.f32 %v324, %v317
      %v326 = vadd.f32 %v306, %v310
      %v327 = vadd.f32 %v326, %v314
      %v328 = vadd.f32 %v327, %v318
      %v329 = vadd.f32 %v307, %v311
      %v330 = vadd.f32 %v329, %v315
      %v331 = vadd.f32 %v330, %v319
      %v332 = vadd.f32 %v322, 0.0
      %v333 = vadd.f32 %v325, 0.0
      %v334 = vadd.f32 %v328, 0.0
      %v335 = vadd.f32 %v331, 0.0
      %v336 = vadd.f32 %v52, %v332
      %v337 = vadd.f32 %v53, %v333
      %v338 = vadd.f32 %v54, %v334
      %v339 = vadd.f32 %v55, %v335
      %340 = vst [vmem:[#allocation2] sm:$0xff] %v336
      %341 = vst [vmem:[#allocation2 + $0x8] sm:$0xff] %v337
      %342 = vst [vmem:[#allocation2 + $0x10] sm:$0xff] %v338
      %343 = vst [vmem:[#allocation2 + $0x18] sm:$0xff] %v339
    $region21: #{tpu_custom_call.1} parent=1 // pred_fallthru
      _
    %p344 = scmp.ne.s32.totalorder 0, 0
    // Predicated region
    $region22: #{tpu_custom_call.1} parent=1 // pred_check
      %p345 = pneg %p344
    $region23: #{tpu_custom_call.1} parent=1 // pred_check_branch
      %347 = sbr.rel (%p345) target = $region25
    $region24: #{tpu_custom_call.1} parent=1 // pred_region
      %v348 = vld [vmem:[#allocation2] sm:$0xff]
      %v349 = vld [vmem:[#allocation2 + $0x8] sm:$0xff]
      %v350 = vld [vmem:[#allocation2 + $0x10] sm:$0xff]
      %v351 = vld [vmem:[#allocation2 + $0x18] sm:$0xff]
      %s352 = smul.u32 0, 4
      %s353 = scalar_lea.vmem [#allocation3], %s352
      %v354 = vld [vmem:[%s353] sm:$0xf]
      %v355 = vld [vmem:[%s353 + $0x4] sm:$0xf]
      %v356 = vld [vmem:[%s353 + $0x8] sm:$0xf]
      %v357 = vld [vmem:[%s353 + $0xc] sm:$0xf]
      %v358 = vld [vmem:[%s353 + $0x10] sm:$0xf]
      %v359 = vld [vmem:[%s353 + $0x14] sm:$0xf]
      %v360 = vld [vmem:[%s353 + $0x18] sm:$0xf]
      %v361 = vld [vmem:[%s353 + $0x1c] sm:$0xf]
      %v362 = vld [vmem:[%s353 + $0x20] sm:$0xf]
      %v363 = vld [vmem:[%s353 + $0x24] sm:$0xf]
      %v364 = vld [vmem:[%s353 + $0x28] sm:$0xf]
      %v365 = vld [vmem:[%s353 + $0x2c] sm:$0xf]
      %v366 = vld [vmem:[%s353 + $0x30] sm:$0xf]
      %v367 = vld [vmem:[%s353 + $0x34] sm:$0xf]
      %v368 = vld [vmem:[%s353 + $0x38] sm:$0xf]
      %v369 = vld [vmem:[%s353 + $0x3c] sm:$0xf]
      %v370 = vld [vmem:[%s353 + $0x40] sm:$0xf]
      %v371 = vld [vmem:[%s353 + $0x44] sm:$0xf]
      %v372 = vld [vmem:[%s353 + $0x48] sm:$0xf]
      %v373 = vld [vmem:[%s353 + $0x4c] sm:$0xf]
      %v374 = vld [vmem:[%s353 + $0x50] sm:$0xf]
      %v375 = vld [vmem:[%s353 + $0x54] sm:$0xf]
      %v376 = vld [vmem:[%s353 + $0x58] sm:$0xf]
      %v377 = vld [vmem:[%s353 + $0x5c] sm:$0xf]
      %v378 = vld [vmem:[%s353 + $0x60] sm:$0xf]
      %v379 = vld [vmem:[%s353 + $0x64] sm:$0xf]
      %v380 = vld [vmem:[%s353 + $0x68] sm:$0xf]
      %v381 = vld [vmem:[%s353 + $0x6c] sm:$0xf]
      %v382 = vld [vmem:[%s353 + $0x70] sm:$0xf]
      %v383 = vld [vmem:[%s353 + $0x74] sm:$0xf]
      %v384 = vld [vmem:[%s353 + $0x78] sm:$0xf]
      %v385 = vld [vmem:[%s353 + $0x7c] sm:$0xf]
      %s386 = scalar_lea.vmem [#allocation6], %s352
      %v387 = vld [vmem:[%s386] sm:$0xf]
      %v388 = vld [vmem:[%s386 + $0x4] sm:$0xf]
      %v389 = vld [vmem:[%s386 + $0x8] sm:$0xf]
      %v390 = vld [vmem:[%s386 + $0xc] sm:$0xf]
      %v391 = vld [vmem:[%s386 + $0x10] sm:$0xf]
      %v392 = vld [vmem:[%s386 + $0x14] sm:$0xf]
      %v393 = vld [vmem:[%s386 + $0x18] sm:$0xf]
      %v394 = vld [vmem:[%s386 + $0x1c] sm:$0xf]
      %v395 = vld [vmem:[%s386 + $0x20] sm:$0xf]
      %v396 = vld [vmem:[%s386 + $0x24] sm:$0xf]
      %v397 = vld [vmem:[%s386 + $0x28] sm:$0xf]
      %v398 = vld [vmem:[%s386 + $0x2c] sm:$0xf]
      %v399 = vld [vmem:[%s386 + $0x30] sm:$0xf]
      %v400 = vld [vmem:[%s386 + $0x34] sm:$0xf]
      %v401 = vld [vmem:[%s386 + $0x38] sm:$0xf]
      %v402 = vld [vmem:[%s386 + $0x3c] sm:$0xf]
      %v403 = vld [vmem:[%s386 + $0x40] sm:$0xf]
      %v404 = vld [vmem:[%s386 + $0x44] sm:$0xf]
      %v405 = vld [vmem:[%s386 + $0x48] sm:$0xf]
      %v406 = vld [vmem:[%s386 + $0x4c] sm:$0xf]
      %v407 = vld [vmem:[%s386 + $0x50] sm:$0xf]
      %v408 = vld [vmem:[%s386 + $0x54] sm:$0xf]
      %v409 = vld [vmem:[%s386 + $0x58] sm:$0xf]
      %v410 = vld [vmem:[%s386 + $0x5c] sm:$0xf]
      %v411 = vld [vmem:[%s386 + $0x60] sm:$0xf]
      %v412 = vld [vmem:[%s386 + $0x64] sm:$0xf]
      %v413 = vld [vmem:[%s386 + $0x68] sm:$0xf]
      %v414 = vld [vmem:[%s386 + $0x6c] sm:$0xf]
      %v415 = vld [vmem:[%s386 + $0x70] sm:$0xf]
      %v416 = vld [vmem:[%s386 + $0x74] sm:$0xf]
      %v417 = vld [vmem:[%s386 + $0x78] sm:$0xf]
      %v418 = vld [vmem:[%s386 + $0x7c] sm:$0xf]
      %v419 = vsub.f32 %v354, %v387
      %v420 = vsub.f32 %v355, %v388
      %v421 = vsub.f32 %v356, %v389
      %v422 = vsub.f32 %v357, %v390
      %v423 = vsub.f32 %v358, %v391
      %v424 = vsub.f32 %v359, %v392
      %v425 = vsub.f32 %v360, %v393
      %v426 = vsub.f32 %v361, %v394
      %v427 = vsub.f32 %v362, %v395
      %v428 = vsub.f32 %v363, %v396
      %v429 = vsub.f32 %v364, %v397
      %v430 = vsub.f32 %v365, %v398
      %v431 = vsub.f32 %v366, %v399
      %v432 = vsub.f32 %v367, %v400
      %v433 = vsub.f32 %v368, %v401
      %v434 = vsub.f32 %v369, %v402
      %v435 = vsub.f32 %v370, %v403
      %v436 = vsub.f32 %v371, %v404
      %v437 = vsub.f32 %v372, %v405
      %v438 = vsub.f32 %v373, %v406
      %v439 = vsub.f32 %v374, %v407
      %v440 = vsub.f32 %v375, %v408
      %v441 = vsub.f32 %v376, %v409
      %v442 = vsub.f32 %v377, %v410
      %v443 = vsub.f32 %v378, %v411
      %v444 = vsub.f32 %v379, %v412
      %v445 = vsub.f32 %v380, %v413
      %v446 = vsub.f32 %v381, %v414
      %v447 = vsub.f32 %v382, %v415
      %v448 = vsub.f32 %v383, %v416
      %v449 = vsub.f32 %v384, %v417
      %v450 = vsub.f32 %v385, %v418
      %v451 = vmul.f32 %v419, %v419
      %v452 = vmul.f32 %v420, %v420
      %v453 = vmul.f32 %v421, %v421
      %v454 = vmul.f32 %v422, %v422
      %v455 = vmul.f32 %v423, %v423
      %v456 = vmul.f32 %v424, %v424
      %v457 = vmul.f32 %v425, %v425
      %v458 = vmul.f32 %v426, %v426
      %v459 = vmul.f32 %v427, %v427
      %v460 = vmul.f32 %v428, %v428
      %v461 = vmul.f32 %v429, %v429
      %v462 = vmul.f32 %v430, %v430
      %v463 = vmul.f32 %v431, %v431
      %v464 = vmul.f32 %v432, %v432
      %v465 = vmul.f32 %v433, %v433
      %v466 = vmul.f32 %v434, %v434
      %v467 = vmul.f32 %v435, %v435
      %v468 = vmul.f32 %v436, %v436
      %v469 = vmul.f32 %v437, %v437
      %v470 = vmul.f32 %v438, %v438
      %v471 = vmul.f32 %v439, %v439
      %v472 = vmul.f32 %v440, %v440
      %v473 = vmul.f32 %v441, %v441
      %v474 = vmul.f32 %v442, %v442
      %v475 = vmul.f32 %v443, %v443
      %v476 = vmul.f32 %v444, %v444
      %v477 = vmul.f32 %v445, %v445
      %v478 = vmul.f32 %v446, %v446
      %v479 = vmul.f32 %v447, %v447
      %v480 = vmul.f32 %v448, %v448
      %v481 = vmul.f32 %v449, %v449
      %v482 = vmul.f32 %v450, %v450
      %515 = vst [vmem:[#allocation1] ss:$9 sm:$0xff] %v451
      %s516 = scalar_lea.vmem [#allocation1], 1
      %517 = vst [vmem:[%s516] ss:$9 sm:$0xff] %v452
      %s518 = scalar_lea.vmem [#allocation1], 2
      %519 = vst [vmem:[%s518] ss:$9 sm:$0xff] %v453
      %s520 = scalar_lea.vmem [#allocation1], 3
      %521 = vst [vmem:[%s520] ss:$9 sm:$0xff] %v454
      %s522 = scalar_lea.vmem [#allocation1], 4
      %523 = vst [vmem:[%s522] ss:$9 sm:$0xff] %v455
      %s524 = scalar_lea.vmem [#allocation1], 5
      %525 = vst [vmem:[%s524] ss:$9 sm:$0xff] %v456
      %s526 = scalar_lea.vmem [#allocation1], 6
      %527 = vst [vmem:[%s526] ss:$9 sm:$0xff] %v457
      %s528 = scalar_lea.vmem [#allocation1], 7
      %529 = vst [vmem:[%s528] ss:$9 sm:$0xff] %v458
      %v530 = vld [vmem:[#allocation1] sm:$0xff]
      %v531 = vld [vmem:[#allocation1 + $0x9] sm:$0xff]
      %v532 = vld [vmem:[#allocation1 + $0x12] sm:$0xff]
      %v533 = vld [vmem:[#allocation1 + $0x1b] sm:$0xff]
      %534 = vst [vmem:[#allocation1] ss:$9 sm:$0xff] %v459
      %535 = vst [vmem:[%s516] ss:$9 sm:$0xff] %v460
      %536 = vst [vmem:[%s518] ss:$9 sm:$0xff] %v461
      %537 = vst [vmem:[%s520] ss:$9 sm:$0xff] %v462
      %538 = vst [vmem:[%s522] ss:$9 sm:$0xff] %v463
      %539 = vst [vmem:[%s524] ss:$9 sm:$0xff] %v464
      %540 = vst [vmem:[%s526] ss:$9 sm:$0xff] %v465
      %541 = vst [vmem:[%s528] ss:$9 sm:$0xff] %v466
      %v542 = vld [vmem:[#allocation1] sm:$0xff]
      %v543 = vld [vmem:[#allocation1 + $0x9] sm:$0xff]
      %v544 = vld [vmem:[#allocation1 + $0x12] sm:$0xff]
      %v545 = vld [vmem:[#allocation1 + $0x1b] sm:$0xff]
      %546 = vst [vmem:[#allocation1] ss:$9 sm:$0xff] %v467
      %547 = vst [vmem:[%s516] ss:$9 sm:$0xff] %v468
      %548 = vst [vmem:[%s518] ss:$9 sm:$0xff] %v469
      %549 = vst [vmem:[%s520] ss:$9 sm:$0xff] %v470
      %550 = vst [vmem:[%s522] ss:$9 sm:$0xff] %v471
      %551 = vst [vmem:[%s524] ss:$9 sm:$0xff] %v472
      %552 = vst [vmem:[%s526] ss:$9 sm:$0xff] %v473
      %553 = vst [vmem:[%s528] ss:$9 sm:$0xff] %v474
      %v554 = vld [vmem:[#allocation1] sm:$0xff]
      %v555 = vld [vmem:[#allocation1 + $0x9] sm:$0xff]
      %v556 = vld [vmem:[#allocation1 + $0x12] sm:$0xff]
      %v557 = vld [vmem:[#allocation1 + $0x1b] sm:$0xff]
      %558 = vst [vmem:[#allocation1] ss:$9 sm:$0xff] %v475
      %559 = vst [vmem:[%s516] ss:$9 sm:$0xff] %v476
      %560 = vst [vmem:[%s518] ss:$9 sm:$0xff] %v477
      %561 = vst [vmem:[%s520] ss:$9 sm:$0xff] %v478
      %562 = vst [vmem:[%s522] ss:$9 sm:$0xff] %v479
      %563 = vst [vmem:[%s524] ss:$9 sm:$0xff] %v480
      %564 = vst [vmem:[%s526] ss:$9 sm:$0xff] %v481
      %565 = vst [vmem:[%s528] ss:$9 sm:$0xff] %v482
      %v566 = vld [vmem:[#allocation1] sm:$0xff]
      %v567 = vld [vmem:[#allocation1 + $0x9] sm:$0xff]
      %v568 = vld [vmem:[#allocation1 + $0x12] sm:$0xff]
      %v569 = vld [vmem:[#allocation1 + $0x1b] sm:$0xff]
      %v586 = vadd.f32 %v530, %v542
      %v587 = vadd.f32 %v586, %v554
      %v588 = vadd.f32 %v587, %v566
      %v589 = vadd.f32 %v531, %v543
      %v590 = vadd.f32 %v589, %v555
      %v591 = vadd.f32 %v590, %v567
      %v592 = vadd.f32 %v532, %v544
      %v593 = vadd.f32 %v592, %v556
      %v594 = vadd.f32 %v593, %v568
      %v595 = vadd.f32 %v533, %v545
      %v596 = vadd.f32 %v595, %v557
      %v597 = vadd.f32 %v596, %v569
      %v598 = vadd.f32 %v588, 0.0
      %v599 = vadd.f32 %v591, 0.0
      %v600 = vadd.f32 %v594, 0.0
      %v601 = vadd.f32 %v597, 0.0
      %v602 = vadd.f32 %v348, %v598
      %v603 = vadd.f32 %v349, %v599
      %v604 = vadd.f32 %v350, %v600
      %v605 = vadd.f32 %v351, %v601
      %606 = vst [vmem:[#allocation2] sm:$0xff] %v602
      %607 = vst [vmem:[#allocation2 + $0x8] sm:$0xff] %v603
      %608 = vst [vmem:[#allocation2 + $0x10] sm:$0xff] %v604
      %609 = vst [vmem:[#allocation2 + $0x18] sm:$0xff] %v605
    $region25: #{tpu_custom_call.1} parent=1 // pred_fallthru
      _
    // Predicated region
    $region26: #{tpu_custom_call.1} parent=1 // pred_check
      %p610 = pneg %p44
    $region27: #{tpu_custom_call.1} parent=1 // pred_check_branch
      %612 = sbr.rel (%p610) target = $region29
    $region28: #{tpu_custom_call.1} parent=1 // pred_region
      %v613 = vld [vmem:[#allocation2] sm:$0xff]
      %v614 = vld [vmem:[#allocation2 + $0x8] sm:$0xff]
      %v615 = vld [vmem:[#allocation2 + $0x10] sm:$0xff]
      %v616 = vld [vmem:[#allocation2 + $0x18] sm:$0xff]
      %v617 = vadd.f32 %v613, %v614
      %v618 = vadd.f32 %v617, %v615
      %v619 = vadd.f32 %v618, %v616
      %620 = vadd.xlane.f32.xlu0 %v619
      %v621 = vpop.xlane.xlu0 %620
      %v622 = vrot.slane %v621, 4
      %v623 = vadd.f32 %v621, %v622
      %v624 = vrot.slane %v623, 2
      %v625 = vadd.f32 %v623, %v624
      %v626 = vrot.slane %v625, 1
      %v627 = vadd.f32 %v625, %v626
      %s628 = vtos %v627
      %s629 = scalar_lea.smem [#allocation8], 0
      %630 = sst [smem:[%s629]] %s628
    $region29: #{tpu_custom_call.1} parent=1 // pred_fallthru
      _
    // Predicated region
    $region30: #{tpu_custom_call.1} parent=1 // pred_check
      _
    $region31: #{tpu_custom_call.1} parent=1 // pred_check_branch
      %632 = sbr.rel (0) target = $region33
    $region32: #{tpu_custom_call.1} parent=1 // pred_region
      %634 = vsyncadd [#allocation5], 0
      %s636 = sshll.u32 %s2, 4
      %s637 = int_to_ptr.hbm [resolvable:$true] %s636
      %639 = dma.smem_to_hbm [#allocation8], 16, %s637, [#allocation5]
    $region33: #{tpu_custom_call.1} parent=1 // pred_fallthru
      _
    // Predicated region
    $region34: #{tpu_custom_call.1} parent=1 // pred_check
      _
    $region35: #{tpu_custom_call.1} parent=1 // pred_check_branch
      %641 = sbr.rel (0) target = $region37
    $region36: #{tpu_custom_call.1} parent=1 // pred_region
      %643 = dma.done [#allocation5], 16
    $region37: #{tpu_custom_call.1} parent=1 // pred_fallthru
      _
    %644 = sfence
    %645 = vsyncpa [#allocation4], 1
    %646 = vsyncpa [#allocation7], 1
    %647 = vsyncpa [#allocation5], 1

</llo_original>
